<compile_context>
chip_gen: v7x
topology: tpu7x:2x2x1
jax: 0.10.0
libtpu: 0.0.40
codegen_flags: <defaults>
</compile_context>

<pallas_src>
import math
import numpy as np
import jax
import jax.numpy as jnp
from jax import lax
from jax.experimental import pallas as pl
from jax.experimental.pallas import tpu as pltpu

# ---- small, module-consistent hyper-parameters ----
B = 2          # batch
SEQ = 16       # sequence length (power of 2 -> cheap same-batch masking)
C_IN = 4       # in_channels
K = 3          # kernel_size (causal conv)
DK = 8         # dk
DV = 8         # dv
NH = 2         # num_heads
DKH = DK * NH  # 16
DVH = DV * NH  # 16
N = B * SEQ    # 32 fused rows

NEG_INF = -1e9              # matches torch's -1000000000.0 future-mask fill
LN10 = math.log(10.0)

assert (SEQ & (SEQ - 1)) == 0, "SEQ must be a power of two for the bit-mask batch test"
_BATCH_MASK = ~(SEQ - 1)    # r & _BATCH_MASK == (r // SEQ) * SEQ for r >= 0

# ---- packed parameter slab layout (rows are 8-aligned per section) ----
_W_IN_ROWS = K * C_IN + 1   # 13: conv/linear weights + bias row (hit by the ones column)
_T1_W_ROW = 16              # rows 16..31 : [w1a | w2a]        (DVH, 2*DV)
_T1_B_ROW = 32              # row  32     : [b1a | b2a]        (1, 2*DV)
_T2_W_ROW = 40              # rows 40..55 : blockdiag(w1b,w2b) (2*DV, 2)
_T2_B_ROW = 56              # row  56     : [b1b , b2b]        (1, 2)
SLAB_ROWS = 64
SLAB_COLS = 2 * DKH + DVH   # 48 (q | k | v columns of W_in)


def conv_attn_2tower_kernel(length_ref,        # SMEM (B,) int32  (scalar prefetch)
                            x_ref,             # (N, K*C_IN+1)  taps + ones column
                            slab_ref,          # (SLAB_ROWS, SLAB_COLS) packed params
                            scal_ref,          # (N, 3)  [coupled | out1 | log10(out2)]
                            score_ref):        # (N, NH*SEQ) packed attention scores
    x_in = x_ref[...]                                            # (32, 13)

    # ---- fused causal-conv Q, causal-conv K, V projection (+ all biases) in one matmul ----
    w_in = slab_ref[0:_W_IN_ROWS, :]                             # (13, 48)
    qkv = jnp.dot(x_in, w_in, preferred_element_type=jnp.float32)  # (32, 48)
    q = qkv[:, 0:DKH]                 # already scaled by 1/sqrt(dk) (folded into the slab)
    k = qkv[:, DKH:2 * DKH]
    v = jnp.maximum(qkv[:, 2 * DKH:], 0.0)                       # Linear + ReLU

    # ---- masks for the batch-fused (32x32) attention ----
    r = lax.broadcasted_iota(jnp.int32, (N, N), 0)               # fused query index
    c = lax.broadcasted_iota(jnp.int32, (N, N), 1)               # fused key index
    same_batch = (r & _BATCH_MASK) == (c & _BATCH_MASK)
    allowed = jnp.logical_and(same_batch, c <= r)                # causal within own batch
    mask_bias = jnp.where(allowed, 0.0, NEG_INF)

    rows = lax.broadcasted_iota(jnp.int32, (N, 1), 0)
    row_batch_start = rows & _BATCH_MASK
    local_of_row = rows - row_batch_start
    len_col = jnp.zeros((N, 1), jnp.int32)
    for b in range(B):                                           # tiny static unroll
        len_col = jnp.where(row_batch_start == b * SEQ, length_ref[b], len_col)
    valid_row = local_of_row < len_col                           # padding mask (per query row)

    # ---- per-head attention, fused over the batch ----
    dn = (((1,), (1,)), ((), ()))                                # q @ k^T without a transpose
    out0_parts = []
    score_parts = []
    for h in range(NH):
        qh = q[:, h * DK:(h + 1) * DK]
        kh = k[:, h * DK:(h + 1) * DK]
        vh = v[:, h * DV:(h + 1) * DV]
        attn = lax.dot_general(qh, kh, dn, preferred_element_type=jnp.float32) + mask_bias
        attn = attn - jnp.max(attn, axis=-1, keepdims=True)
        e = jnp.exp(attn)                                        # masked entries underflow to 0
        p = e * pl.reciprocal(jnp.sum(e, axis=-1, keepdims=True), approx=True)
        p = jnp.where(valid_row, p, 0.0)                         # zero query rows >= length
        # dropout(score): identity (inference)
        out0_parts.append(jnp.dot(p, vh, preferred_element_type=jnp.float32))  # (32, DV)
        # per-batch diagonal blocks are the real scores
        score_parts.append(jnp.concatenate(
            [p[b * SEQ:(b + 1) * SEQ, b * SEQ:(b + 1) * SEQ] for b in range(B)], axis=0))

    out0 = jnp.concatenate(out0_parts, axis=-1)                  # merged heads (32, DVH)
    score_ref[...] = jnp.concatenate(score_parts, axis=-1)       # (32, NH*SEQ)

    # ---- both towers, fused: Linear -> ReLU -> Linear ----
    w_t1 = slab_ref[_T1_W_ROW:_T1_W_ROW + DVH, 0:2 * DV]         # (16, 16) = [w1a | w2a]
    b_t1 = slab_ref[_T1_B_ROW:_T1_B_ROW + 1, 0:2 * DV]           # (1, 16)
    h12 = jnp.maximum(jnp.dot(out0, w_t1, preferred_element_type=jnp.float32) + b_t1, 0.0)

    w_t2 = slab_ref[_T2_W_ROW:_T2_W_ROW + 2 * DV, 0:2]           # (16, 2) block-diagonal
    b_t2 = slab_ref[_T2_B_ROW:_T2_B_ROW + 1, 0:2]                # (1, 2)
    o12 = jnp.dot(h12, w_t2, preferred_element_type=jnp.float32) + b_t2

    o1 = o12[:, 0:1]                                             # tower 1 output
    o2_log = o12[:, 1:2]                                         # tower 2 output (log10 space)
    o2 = jnp.exp(o2_log * LN10)                                  # 10 ** o2_log

    # ---- coupling ----
    mean_out = (o1 + o2) * 0.5
    w_lg = 1.008 * pl.reciprocal(1.0 + 0.009428 * jnp.exp(10.78 * mean_out), approx=True)
    coupled = (1.0 - w_lg) * o1 + w_lg * o2

    scal_ref[...] = jnp.concatenate([coupled, o1, o2_log], axis=-1)   # (32, 3)


# ---- host-side packing helpers (pure layout work, fused by jit) ----
def _pack_inputs(x):
    """(B,SEQ,C_IN) -> (B*SEQ, K*C_IN + 1): K causal taps + ones column (for the biases)."""
    xp = jnp.pad(x, ((0, 0), (K - 1, 0), (0, 0)))
    taps = jnp.concatenate([xp[:, j:j + SEQ, :] for j in range(K)], axis=-1)
    ones = jnp.ones((x.shape[0], SEQ, 1), jnp.float32)
    return jnp.concatenate([taps, ones], axis=-1).reshape(B * SEQ, K * C_IN + 1)


def _pack_params(params):
    """14 parameter tensors -> one (SLAB_ROWS, SLAB_COLS) f32 slab (1 DMA)."""
    (wq, bq, wk_, bk, wv, bv, w1a, b1a, w1b, b1b, w2a, b2a, w2b, b2b) = params
    scale = 1.0 / math.sqrt(DK)

    w_in = jnp.zeros((_W_IN_ROWS, SLAB_COLS), jnp.float32)
    for j in range(K):
        w_in = w_in.at[j * C_IN:(j + 1) * C_IN, 0:DKH].set(wq[j])
        w_in = w_in.at[j * C_IN:(j + 1) * C_IN, DKH:2 * DKH].set(wk_[j])
    # V uses the un-shifted input, i.e. tap j = K-1
    w_in = w_in.at[(K - 1) * C_IN:K * C_IN, 2 * DKH:].set(wv)
    # bias row (multiplied by the ones column of x_in)
    w_in = w_in.at[K * C_IN, 0:DKH].set(bq[0])
    w_in = w_in.at[K * C_IN, DKH:2 * DKH].set(bk[0])
    w_in = w_in.at[K * C_IN, 2 * DKH:].set(bv[0])
    # fold 1/sqrt(dk) into the Q projection (weights + bias)
    w_in = w_in.at[:, 0:DKH].multiply(scale)

    slab = jnp.zeros((SLAB_ROWS, SLAB_COLS), jnp.float32)
    slab = slab.at[0:_W_IN_ROWS, :].set(w_in)
    slab = slab.at[_T1_W_ROW:_T1_W_ROW + DVH, 0:2 * DV].set(jnp.concatenate([w1a, w2a], axis=1))
    slab = slab.at[_T1_B_ROW, 0:2 * DV].set(jnp.concatenate([b1a, b2a], axis=1)[0])
    slab = slab.at[_T2_W_ROW:_T2_W_ROW + DV, 0].set(w1b[:, 0])
    slab = slab.at[_T2_W_ROW + DV:_T2_W_ROW + 2 * DV, 1].set(w2b[:, 0])
    slab = slab.at[_T2_B_ROW, 0].set(b1b[0, 0])
    slab = slab.at[_T2_B_ROW, 1].set(b2b[0, 0])
    return slab


@jax.jit
def conv_attn_2tower(x, length, params):
    x_in = _pack_inputs(x)
    slab = _pack_params(params)

    grid_spec = pltpu.PrefetchScalarGridSpec(
        num_scalar_prefetch=1,
        grid=(1,),                                   # batch folded into one grid step
        in_specs=[
            pl.BlockSpec((N, K * C_IN + 1), lambda i, L: (0, 0)),
            pl.BlockSpec((SLAB_ROWS, SLAB_COLS), lambda i, L: (0, 0)),
        ],
        out_specs=[
            pl.BlockSpec((N, 3), lambda i, L: (0, 0)),
            pl.BlockSpec((N, NH * SEQ), lambda i, L: (0, 0)),
        ],
    )

    scal, score_packed = pl.pallas_call(
        conv_attn_2tower_kernel,
        out_shape=(jax.ShapeDtypeStruct((N, 3), jnp.float32),
                   jax.ShapeDtypeStruct((N, NH * SEQ), jnp.float32)),
        grid_spec=grid_spec,
        compiler_params=pltpu.CompilerParams(dimension_semantics=("arbitrary",)),
    )(length, x_in, slab)

    coupled = scal[:, 0].reshape(B, SEQ, 1)
    out1 = scal[:, 1].reshape(B, SEQ, 1)
    out2 = scal[:, 2].reshape(B, SEQ, 1)                 # already log10(out2)
    score = score_packed.reshape(B, SEQ, NH, SEQ).transpose(0, 2, 1, 3)
    return coupled, [out1, out2], score


# ---- deterministic parameter init (kaiming-like scaled normals) ----
def init_params(key):
    ks = jax.random.split(key, 14)

    def w(k, shape, scale=0.2):
        return scale * jax.random.normal(k, shape, jnp.float32)

    def bias(k, shape, scale=0.05):
        return scale * jax.random.normal(k, shape, jnp.float32)

    wq = w(ks[0], (K, C_IN, DKH));  bq = bias(ks[1], (1, DKH))
    wk_ = w(ks[2], (K, C_IN, DKH)); bk = bias(ks[3], (1, DKH))
    wv = w(ks[4], (C_IN, DVH));     bv = bias(ks[5], (1, DVH))
    w1a = w(ks[6], (DVH, DV));      b1a = bias(ks[7], (1, DV))
    w1b = w(ks[8], (DV, 1));        b1b = bias(ks[9], (1, 1))
    w2a = w(ks[10], (DVH, DV));     b2a = bias(ks[11], (1, DV))
    w2b = w(ks[12], (DV, 1));       b2b = bias(ks[13], (1, 1))
    return (wq, bq, wk_, bk, wv, bv, w1a, b1a, w1b, b1b, w2a, b2a, w2b, b2b)


# ---- pure-JAX reference (mirrors the PyTorch forward) for a sanity check ----
def reference(x, length, params):
    (wq, bq, wk_, bk, wv, bv,
     w1a, b1a, w1b, b1b, w2a, b2a, w2b, b2b) = params
    Bsz, S, _ = x.shape
    xp = jnp.pad(x, ((0, 0), (K - 1, 0), (0, 0)))

    def causal_conv(W, bias):
        acc = jnp.zeros((Bsz, S, W.shape[-1]), jnp.float32) + bias
        for j in range(K):
            acc = acc + jnp.einsum('bsc,co->bso', xp[:, j:j + S, :], W[j])
        return acc

    q = causal_conv(wq, bq)
    kmat = causal_conv(wk_, bk)
    v = jnp.maximum(jnp.einsum('bsc,co->bso', x, wv) + bv, 0.0)

    qh = q.reshape(Bsz, S, NH, DK).transpose(0, 2, 1, 3)
    kh = kmat.reshape(Bsz, S, NH, DK).transpose(0, 2, 1, 3)
    vh = v.reshape(Bsz, S, NH, DV).transpose(0, 2, 1, 3)

    attn = jnp.einsum('bhqd,bhkd->bhqk', qh, kh) / math.sqrt(DK)
    r = jnp.arange(S)[:, None]
    c = jnp.arange(S)[None, :]
    attn = attn + jnp.where(c > r, NEG_INF, 0.0)
    score = jax.nn.softmax(attn, axis=-1)
    row_valid = jnp.arange(S)[None, None, :, None] < length[:, None, None, None]
    score = jnp.where(row_valid, score, 0.0)

    out0 = jnp.einsum('bhqk,bhkd->bhqd', score, vh).transpose(0, 2, 1, 3).reshape(Bsz, S, DVH)
    h1 = jnp.maximum(out0 @ w1a + b1a, 0.0)
    o1 = h1 @ w1b + b1b
    h2 = jnp.maximum(out0 @ w2a + b2a, 0.0)
    o2l = h2 @ w2b + b2b
    o2 = 10.0 ** o2l
    mean = (o1 + o2) * 0.5
    wlg = 1.008 / (1.0 + 0.009428 * jnp.exp(10.78 * mean))
    coupled = (1.0 - wlg) * o1 + wlg * o2
    return coupled, o1, jnp.log10(o2), score


if __name__ == "__main__":
    key = jax.random.PRNGKey(0)
    kx, kp = jax.random.split(key)
    x = jax.random.normal(kx, (B, SEQ, C_IN), jnp.float32)
    length = jnp.array([SEQ, 9], dtype=jnp.int32)   # real sequence lengths
    params = init_params(kp)

    coupled, (out1, out2), score = conv_attn_2tower(x, length, params)
    jax.block_until_ready(coupled)

    rc, r1, r2, rs = reference(x, length, params)
    np.testing.assert_allclose(np.asarray(coupled), np.asarray(rc), rtol=5e-2, atol=5e-2)
    np.testing.assert_allclose(np.asarray(out1), np.asarray(r1), rtol=5e-2, atol=5e-2)
    np.testing.assert_allclose(np.asarray(out2), np.asarray(r2), rtol=5e-2, atol=5e-2)
    np.testing.assert_allclose(np.asarray(score), np.asarray(rs), rtol=5e-2, atol=5e-2)

    print("KERNEL_OK")
</pallas_src>

<mosaic_0001>
module attributes {stable_mosaic.version = 11 : i64} {
  func.func @conv_attn_2tower_kernel(%arg0: i32, %arg1: memref<2xi32, #tpu.memory_space<smem>>, %arg2: memref<32x13xf32, #tpu.memory_space<vmem>>, %arg3: memref<64x48xf32, #tpu.memory_space<vmem>>, %arg4: memref<32x3xf32, #tpu.memory_space<vmem>>, %arg5: memref<32x32xf32, #tpu.memory_space<vmem>>) attributes {dimension_semantics = [#tpu.dimension_semantics<arbitrary>], iteration_bounds = array<i64: 1>, scalar_prefetch = 1 : i64, scratch_operands = 0 : i64, tpu.core_type = #tpu.core_type<tc>, window_params = [{pipeline_mode = #tpu.pipeline_mode<synchronous>, transform_indices = @transform_0, window_bounds = array<i64: 32, 13>}, {pipeline_mode = #tpu.pipeline_mode<synchronous>, transform_indices = @transform_1, window_bounds = array<i64: 64, 48>}, {pipeline_mode = #tpu.pipeline_mode<synchronous>, transform_indices = @transform_2, window_bounds = array<i64: 32, 3>}, {pipeline_mode = #tpu.pipeline_mode<synchronous>, transform_indices = @transform_3, window_bounds = array<i64: 32, 32>}]} {
    %c0 = arith.constant 0 : index
    %c0_0 = arith.constant 0 : index
    %0 = vector.load %arg2[%c0, %c0_0] : memref<32x13xf32, #tpu.memory_space<vmem>>, vector<32x13xf32>
    %c0_1 = arith.constant 0 : index
    %c0_2 = arith.constant 0 : index
    %1 = vector.load %arg3[%c0_1, %c0_2] : memref<64x48xf32, #tpu.memory_space<vmem>>, vector<13x48xf32>
    %cst = arith.constant dense<0.000000e+00> : vector<32x48xf32>
    %2 = tpu.matmul %0, %1, %cst {dimension_numbers = #tpu.dot_dimension_numbers<[1], [0], [0], [1], [0, 0, 1, 1], [], []>} : vector<32x13xf32>, vector<13x48xf32>, vector<32x48xf32> -> vector<32x48xf32>
    %3 = vector.extract_strided_slice %2 {offsets = [0, 0], sizes = [32, 16], strides = [1, 1]} : vector<32x48xf32> to vector<32x16xf32>
    %4 = vector.extract_strided_slice %2 {offsets = [0, 16], sizes = [32, 16], strides = [1, 1]} : vector<32x48xf32> to vector<32x16xf32>
    %5 = vector.extract_strided_slice %2 {offsets = [0, 32], sizes = [32, 16], strides = [1, 1]} : vector<32x48xf32> to vector<32x16xf32>
    %cst_3 = arith.constant 0.000000e+00 : f32
    %6 = vector.broadcast %cst_3 : f32 to vector<32x16xf32>
    %7 = arith.maximumf %5, %6 : vector<32x16xf32>
    %8 = tpu.iota {dimensions = array<i32: 0>} : vector<32x32xi32>
    %9 = tpu.iota {dimensions = array<i32: 1>} : vector<32x32xi32>
    %c-16_i32 = arith.constant -16 : i32
    %10 = vector.broadcast %c-16_i32 : i32 to vector<32x32xi32>
    %11 = arith.andi %8, %10 : vector<32x32xi32>
    %c-16_i32_4 = arith.constant -16 : i32
    %12 = vector.broadcast %c-16_i32_4 : i32 to vector<32x32xi32>
    %13 = arith.andi %9, %12 : vector<32x32xi32>
    %14 = arith.cmpi eq, %11, %13 : vector<32x32xi32>
    %15 = arith.cmpi sle, %9, %8 : vector<32x32xi32>
    %16 = arith.andi %14, %15 : vector<32x32xi1>
    %cst_5 = arith.constant 0.000000e+00 : f32
    %cst_6 = arith.constant -1.000000e+09 : f32
    %17 = vector.broadcast %cst_5 : f32 to vector<32x32xf32>
    %18 = vector.broadcast %cst_6 : f32 to vector<32x32xf32>
    %19 = arith.select %16, %17, %18 : vector<32x32xi1>, vector<32x32xf32>
    %20 = tpu.iota {dimensions = array<i32: 0>} : vector<32x1xi32>
    %c-16_i32_7 = arith.constant -16 : i32
    %21 = vector.broadcast %c-16_i32_7 : i32 to vector<32x1xi32>
    %22 = arith.andi %20, %21 : vector<32x1xi32>
    %23 = arith.subi %20, %22 : vector<32x1xi32>
    %c0_i32 = arith.constant 0 : i32
    %24 = vector.broadcast %c0_i32 : i32 to vector<32x1xi32>
    %c0_i32_8 = arith.constant 0 : i32
    %25 = vector.broadcast %c0_i32_8 : i32 to vector<32x1xi32>
    %26 = arith.cmpi eq, %22, %25 : vector<32x1xi32>
    %c0_9 = arith.constant 0 : index
    %27 = memref.load %arg1[%c0_9] : memref<2xi32, #tpu.memory_space<smem>>
    %28 = vector.broadcast %27 : i32 to vector<32x1xi32>
    %29 = arith.select %26, %28, %24 : vector<32x1xi1>, vector<32x1xi32>
    %c16_i32 = arith.constant 16 : i32
    %30 = vector.broadcast %c16_i32 : i32 to vector<32x1xi32>
    %31 = arith.cmpi eq, %22, %30 : vector<32x1xi32>
    %c1 = arith.constant 1 : index
    %32 = memref.load %arg1[%c1] : memref<2xi32, #tpu.memory_space<smem>>
    %33 = vector.broadcast %32 : i32 to vector<32x1xi32>
    %34 = arith.select %31, %33, %29 : vector<32x1xi1>, vector<32x1xi32>
    %35 = arith.cmpi slt, %23, %34 : vector<32x1xi32>
    %36 = vector.extract_strided_slice %3 {offsets = [0, 0], sizes = [32, 8], strides = [1, 1]} : vector<32x16xf32> to vector<32x8xf32>
    %37 = vector.extract_strided_slice %4 {offsets = [0, 0], sizes = [32, 8], strides = [1, 1]} : vector<32x16xf32> to vector<32x8xf32>
    %38 = vector.extract_strided_slice %7 {offsets = [0, 0], sizes = [32, 8], strides = [1, 1]} : vector<32x16xf32> to vector<32x8xf32>
    %cst_10 = arith.constant dense<0.000000e+00> : vector<32x32xf32>
    %39 = tpu.matmul %36, %37, %cst_10 {dimension_numbers = #tpu.dot_dimension_numbers<[1], [1], [0], [0], [0, 0, 1, 0], [], []>} : vector<32x8xf32>, vector<32x8xf32>, vector<32x32xf32> -> vector<32x32xf32>
    %40 = arith.addf %39, %19 : vector<32x32xf32>
    %cst_11 = arith.constant dense<0xFF800000> : vector<32xf32>
    %41 = vector.multi_reduction <maximumf>, %40, %cst_11 [1] : vector<32x32xf32> to vector<32xf32>
    %42 = vector.shape_cast %41 : vector<32xf32> to vector<32x1xf32>
    %43 = vector.broadcast %42 : vector<32x1xf32> to vector<32x32xf32>
    %44 = arith.subf %40, %43 : vector<32x32xf32>
    %45 = math.exp %44 : vector<32x32xf32>
    %cst_12 = arith.constant dense<0.000000e+00> : vector<32xf32>
    %46 = vector.multi_reduction <add>, %45, %cst_12 [1] : vector<32x32xf32> to vector<32xf32>
    %47 = vector.shape_cast %46 : vector<32xf32> to vector<32x1xf32>
    %48 = tpu.reciprocal %47 {approx = true} : vector<32x1xf32> -> vector<32x1xf32>
    %49 = vector.broadcast %48 : vector<32x1xf32> to vector<32x32xf32>
    %50 = arith.mulf %45, %49 : vector<32x32xf32>
    %cst_13 = arith.constant 0.000000e+00 : f32
    %51 = vector.shape_cast %35 : vector<32x1xi1> to vector<32x1xi1>
    %52 = vector.broadcast %51 : vector<32x1xi1> to vector<32x32xi1>
    %53 = vector.broadcast %cst_13 : f32 to vector<32x32xf32>
    %54 = arith.select %52, %50, %53 : vector<32x32xi1>, vector<32x32xf32>
    %cst_14 = arith.constant dense<0.000000e+00> : vector<32x8xf32>
    %55 = tpu.matmul %54, %38, %cst_14 {dimension_numbers = #tpu.dot_dimension_numbers<[1], [0], [0], [1], [0, 0, 1, 1], [], []>} : vector<32x32xf32>, vector<32x8xf32>, vector<32x8xf32> -> vector<32x8xf32>
    %56 = vector.extract_strided_slice %54 {offsets = [0, 0], sizes = [16, 16], strides = [1, 1]} : vector<32x32xf32> to vector<16x16xf32>
    %57 = vector.extract_strided_slice %54 {offsets = [16, 16], sizes = [16, 16], strides = [1, 1]} : vector<32x32xf32> to vector<16x16xf32>
    %58 = tpu.concatenate %56, %57 in 0 : vector<16x16xf32>, vector<16x16xf32> -> vector<32x16xf32>
    %59 = vector.extract_strided_slice %3 {offsets = [0, 8], sizes = [32, 8], strides = [1, 1]} : vector<32x16xf32> to vector<32x8xf32>
    %60 = vector.extract_strided_slice %4 {offsets = [0, 8], sizes = [32, 8], strides = [1, 1]} : vector<32x16xf32> to vector<32x8xf32>
    %61 = vector.extract_strided_slice %7 {offsets = [0, 8], sizes = [32, 8], strides = [1, 1]} : vector<32x16xf32> to vector<32x8xf32>
    %cst_15 = arith.constant dense<0.000000e+00> : vector<32x32xf32>
    %62 = tpu.matmul %59, %60, %cst_15 {dimension_numbers = #tpu.dot_dimension_numbers<[1], [1], [0], [0], [0, 0, 1, 0], [], []>} : vector<32x8xf32>, vector<32x8xf32>, vector<32x32xf32> -> vector<32x32xf32>
    %63 = arith.addf %62, %19 : vector<32x32xf32>
    %cst_16 = arith.constant dense<0xFF800000> : vector<32xf32>
    %64 = vector.multi_reduction <maximumf>, %63, %cst_16 [1] : vector<32x32xf32> to vector<32xf32>
    %65 = vector.shape_cast %64 : vector<32xf32> to vector<32x1xf32>
    %66 = vector.broadcast %65 : vector<32x1xf32> to vector<32x32xf32>
    %67 = arith.subf %63, %66 : vector<32x32xf32>
    %68 = math.exp %67 : vector<32x32xf32>
    %cst_17 = arith.constant dense<0.000000e+00> : vector<32xf32>
    %69 = vector.multi_reduction <add>, %68, %cst_17 [1] : vector<32x32xf32> to vector<32xf32>
    %70 = vector.shape_cast %69 : vector<32xf32> to vector<32x1xf32>
    %71 = tpu.reciprocal %70 {approx = true} : vector<32x1xf32> -> vector<32x1xf32>
    %72 = vector.broadcast %71 : vector<32x1xf32> to vector<32x32xf32>
    %73 = arith.mulf %68, %72 : vector<32x32xf32>
    %cst_18 = arith.constant 0.000000e+00 : f32
    %74 = vector.shape_cast %35 : vector<32x1xi1> to vector<32x1xi1>
    %75 = vector.broadcast %74 : vector<32x1xi1> to vector<32x32xi1>
    %76 = vector.broadcast %cst_18 : f32 to vector<32x32xf32>
    %77 = arith.select %75, %73, %76 : vector<32x32xi1>, vector<32x32xf32>
    %cst_19 = arith.constant dense<0.000000e+00> : vector<32x8xf32>
    %78 = tpu.matmul %77, %61, %cst_19 {dimension_numbers = #tpu.dot_dimension_numbers<[1], [0], [0], [1], [0, 0, 1, 1], [], []>} : vector<32x32xf32>, vector<32x8xf32>, vector<32x8xf32> -> vector<32x8xf32>
    %79 = vector.extract_strided_slice %77 {offsets = [0, 0], sizes = [16, 16], strides = [1, 1]} : vector<32x32xf32> to vector<16x16xf32>
    %80 = vector.extract_strided_slice %77 {offsets = [16, 16], sizes = [16, 16], strides = [1, 1]} : vector<32x32xf32> to vector<16x16xf32>
    %81 = tpu.concatenate %79, %80 in 0 : vector<16x16xf32>, vector<16x16xf32> -> vector<32x16xf32>
    %82 = tpu.concatenate %55, %78 in 1 : vector<32x8xf32>, vector<32x8xf32> -> vector<32x16xf32>
    %83 = tpu.concatenate %58, %81 in 1 : vector<32x16xf32>, vector<32x16xf32> -> vector<32x32xf32>
    %c0_20 = arith.constant 0 : index
    %c0_21 = arith.constant 0 : index
    %84 = vector.load %arg5[%c0_20, %c0_21] : memref<32x32xf32, #tpu.memory_space<vmem>>, vector<32x32xf32>
    tpu.vector_store %arg5[%c0_20, %c0_21], %83 {strides = array<i32>} : memref<32x32xf32, #tpu.memory_space<vmem>>, vector<32x32xf32>,
    %c16 = arith.constant 16 : index
    %c0_22 = arith.constant 0 : index
    %85 = vector.load %arg3[%c16, %c0_22] : memref<64x48xf32, #tpu.memory_space<vmem>>, vector<16x16xf32>
    %c32 = arith.constant 32 : index
    %c0_23 = arith.constant 0 : index
    %86 = vector.load %arg3[%c32, %c0_23] : memref<64x48xf32, #tpu.memory_space<vmem>>, vector<1x16xf32>
    %cst_24 = arith.constant dense<0.000000e+00> : vector<32x16xf32>
    %87 = tpu.matmul %82, %85, %cst_24 {dimension_numbers = #tpu.dot_dimension_numbers<[1], [0], [0], [1], [0, 0, 1, 1], [], []>} : vector<32x16xf32>, vector<16x16xf32>, vector<32x16xf32> -> vector<32x16xf32>
    %88 = vector.broadcast %86 : vector<1x16xf32> to vector<32x16xf32>
    %89 = arith.addf %87, %88 : vector<32x16xf32>
    %cst_25 = arith.constant 0.000000e+00 : f32
    %90 = vector.broadcast %cst_25 : f32 to vector<32x16xf32>
    %91 = arith.maximumf %89, %90 : vector<32x16xf32>
    %c40 = arith.constant 40 : index
    %c0_26 = arith.constant 0 : index
    %92 = vector.load %arg3[%c40, %c0_26] : memref<64x48xf32, #tpu.memory_space<vmem>>, vector<16x2xf32>
    %c56 = arith.constant 56 : index
    %c0_27 = arith.constant 0 : index
    %93 = vector.load %arg3[%c56, %c0_27] : memref<64x48xf32, #tpu.memory_space<vmem>>, vector<1x2xf32>
    %cst_28 = arith.constant dense<0.000000e+00> : vector<32x2xf32>
    %94 = tpu.matmul %91, %92, %cst_28 {dimension_numbers = #tpu.dot_dimension_numbers<[1], [0], [0], [1], [0, 0, 1, 1], [], []>} : vector<32x16xf32>, vector<16x2xf32>, vector<32x2xf32> -> vector<32x2xf32>
    %95 = vector.broadcast %93 : vector<1x2xf32> to vector<32x2xf32>
    %96 = arith.addf %94, %95 : vector<32x2xf32>
    %97 = vector.extract_strided_slice %96 {offsets = [0, 0], sizes = [32, 1], strides = [1, 1]} : vector<32x2xf32> to vector<32x1xf32>
    %98 = vector.extract_strided_slice %96 {offsets = [0, 1], sizes = [32, 1], strides = [1, 1]} : vector<32x2xf32> to vector<32x1xf32>
    %cst_29 = arith.constant 2.30258512 : f32
    %99 = vector.broadcast %cst_29 : f32 to vector<32x1xf32>
    %100 = arith.mulf %98, %99 : vector<32x1xf32>
    %101 = math.exp %100 : vector<32x1xf32>
    %102 = arith.addf %97, %101 : vector<32x1xf32>
    %cst_30 = arith.constant 5.000000e-01 : f32
    %103 = vector.broadcast %cst_30 : f32 to vector<32x1xf32>
    %104 = arith.mulf %102, %103 : vector<32x1xf32>
    %cst_31 = arith.constant 1.078000e+01 : f32
    %105 = vector.broadcast %cst_31 : f32 to vector<32x1xf32>
    %106 = arith.mulf %105, %104 : vector<32x1xf32>
    %107 = math.exp %106 : vector<32x1xf32>
    %cst_32 = arith.constant 9.428000e-03 : f32
    %108 = vector.broadcast %cst_32 : f32 to vector<32x1xf32>
    %109 = arith.mulf %108, %107 : vector<32x1xf32>
    %cst_33 = arith.constant 1.000000e+00 : f32
    %110 = vector.broadcast %cst_33 : f32 to vector<32x1xf32>
    %111 = arith.addf %110, %109 : vector<32x1xf32>
    %112 = tpu.reciprocal %111 {approx = true} : vector<32x1xf32> -> vector<32x1xf32>
    %cst_34 = arith.constant 1.008000e+00 : f32
    %113 = vector.broadcast %cst_34 : f32 to vector<32x1xf32>
    %114 = arith.mulf %113, %112 : vector<32x1xf32>
    %cst_35 = arith.constant 1.000000e+00 : f32
    %115 = vector.broadcast %cst_35 : f32 to vector<32x1xf32>
    %116 = arith.subf %115, %114 : vector<32x1xf32>
    %117 = arith.mulf %116, %97 : vector<32x1xf32>
    %118 = arith.mulf %114, %101 : vector<32x1xf32>
    %119 = arith.addf %117, %118 : vector<32x1xf32>
    %120 = tpu.concatenate %119, %97, %98 in 1 : vector<32x1xf32>, vector<32x1xf32>, vector<32x1xf32> -> vector<32x3xf32>
    %c0_36 = arith.constant 0 : index
    %c0_37 = arith.constant 0 : index
    %121 = vector.load %arg4[%c0_36, %c0_37] : memref<32x3xf32, #tpu.memory_space<vmem>>, vector<32x3xf32>
    tpu.vector_store %arg4[%c0_36, %c0_37], %120 {strides = array<i32>} : memref<32x3xf32, #tpu.memory_space<vmem>>, vector<32x3xf32>,
    return
  }
  func.func @transform_0(%arg0: i32, %arg1: memref<2xi32, #tpu.memory_space<smem>>) -> (i32, i32) {
    %c0_i32 = arith.constant 0 : i32
    %c0_i32_0 = arith.constant 0 : i32
    %c0_i32_1 = arith.constant 0 : i32
    return %c0_i32, %c0_i32_0 : i32, i32
  }
  func.func @transform_1(%arg0: i32, %arg1: memref<2xi32, #tpu.memory_space<smem>>) -> (i32, i32) {
    %c0_i32 = arith.constant 0 : i32
    %c0_i32_0 = arith.constant 0 : i32
    %c0_i32_1 = arith.constant 0 : i32
    return %c0_i32, %c0_i32_0 : i32, i32
  }
  func.func @transform_2(%arg0: i32, %arg1: memref<2xi32, #tpu.memory_space<smem>>) -> (i32, i32) {
    %c0_i32 = arith.constant 0 : i32
    %c0_i32_0 = arith.constant 0 : i32
    %c0_i32_1 = arith.constant 0 : i32
    return %c0_i32, %c0_i32_0 : i32, i32
  }
  func.func @transform_3(%arg0: i32, %arg1: memref<2xi32, #tpu.memory_space<smem>>) -> (i32, i32) {
    %c0_i32 = arith.constant 0 : i32
    %c0_i32_0 = arith.constant 0 : i32
    %c0_i32_1 = arith.constant 0 : i32
    return %c0_i32, %c0_i32_0 : i32, i32
  }
}

</mosaic_0001>

<llo_original>
// kernel: squeeze.32
$region0: #{squeeze.32}
  %s0 = inlined_call_operand.vmem [shape: f32[32], index: 0, kind: input, shape index: {}]
  %s1 = inlined_call_operand.hbm [shape: f32[2,16,1], index: 1, kind: output, shape index: {}]
  $region1: #{squeeze.32} parent=0
    #allocation0 [shape = 'u8[1024]{0}', space=vmem, size = 0x400, scoped, tag = 'operand span for operand 1']
    #allocation1 [shape = 's32[1]{0}', space=sflag, size = 0x4, scoped, tag = 'scoped memory for squeeze.32']
    #allocation2 [shape = 'u8[4096]{0}', space=vmem, size = 0x1000, scoped, tag = 'scoped mem for output reshape']
    #allocation3 [shape = 'u8[4096]{0}', space=vmem, size = 0x1000, scoped, tag = 'scoped mem for input reshape']
    %2 = vsyncpa [#allocation1], 0
    %s4 = sshllo.u32 0, 1
    %v5 = vld [vmem:[%s0] sm:%s4]
    %6 = vst [vmem:[#allocation3] sm:%s4] %v5
    %v7 = vld [vmem:[#allocation3] sm:$0x1]
    %vm8 = vcmask 130048
    %9 = vst.msk [vmem:[#allocation2] sm:$0x1] %vm8, %v7
    %v10 = vld [vmem:[#allocation3] sm:$0x1]
    %11 = vrot.lane.b32.xlu0 %v10, 112
    %v12 = vpop.permute.xlu0 %11
    %vm13 = vcmask 130048
    %s14 = scalar_lea.vmem [#allocation2], 1
    %15 = vst.msk [vmem:[%s14] sm:$0x1] %vm13, %v12
    %s17 = sshllo.u32 0, 2
    %v19 = vld [vmem:[#allocation2] sm:%s17]
    %s20 = sshllo.u32 0, 2
    %21 = vst [vmem:[#allocation0] sm:%s20] %v19
    %s23 = ssub.s32 32, 32
    %24 = vsyncadd [#allocation1], %s23
    %s26 = sshll.u32 [#allocation0], 4
    %s27 = int_to_ptr.vmem [resolvable:$true] %s26
    %29 = dma.vmem_to_hbm [thread:$0]  %s27, 32, %s1, [#allocation1]
    %30 = dma.done [#allocation1], 32
    %31 = vsyncpa [#allocation1], 1

// kernel: conv_attn_2tower.1
$region0: #{conv_attn_2tower.1}
  #allocation0 [shape = 'u32[]', space=smem, size = 0x4, offset = 0x4, fixed_abs, tag = 'smem constant byte address 0x4 - core index']
  #allocation1 [shape = 'u32[144,128]{1,0:T(1,128)}', space=vmem, size = 0x12000, scoped, tag = 'internal scratch']
  #allocation2 [shape = 's32[1]{0}', space=sflag, size = 0x4, scoped, tag = 'scoped memory for conv_attn_2tower.1']
  #allocation3 [shape = 'u8[512]{0}', space=smem, size = 0x200, scoped, tag = 'prefetched SMEM operand 0']
  %s0 = inlined_call_operand.vmem [shape: s32[2], index: 0, kind: input, shape index: {}]
  %s1 = inlined_call_operand.vmem [shape: f32[32,13], index: 1, kind: input, shape index: {}]
  %s2 = inlined_call_operand.vmem [shape: f32[64,48], index: 2, kind: input, shape index: {}]
  %s3 = inlined_call_operand.vmem [shape: f32[32,3], index: 3, kind: output, shape index: {0}]
  %s4 = inlined_call_operand.vmem [shape: f32[32,32], index: 4, kind: output, shape index: {1}]
  %5 = xla_tuple %s3, %s4
  %s6 = sld [smem:[#allocation0]]
  $region26: #{conv_attn_2tower.1} parent=0
    _
  %s8 = ssub.s32 1, %s6
  %s9 = scalar_select 0, %s8, %s6
  %s10 = sshll.u32 %s0, 4
  %s11 = int_to_ptr.vmem [resolvable:$true] %s10
  %13 = dma.vmem_to_smem %s11, 16, [#allocation3], [#allocation2]
  %14 = dma.done [#allocation2], 16
  %15 = sfence
  // Predicated region
  $region2: #{conv_attn_2tower.1} parent=0 // pred_check
    _
  $region3: #{conv_attn_2tower.1} parent=0 // pred_check_branch
    %17 = sbr.rel (0) target = $region5
  $region4: #{conv_attn_2tower.1} parent=0 // pred_region
    _
  $region5: #{conv_attn_2tower.1} parent=0 // pred_fallthru
    _
  // Predicated region
  $region6: #{conv_attn_2tower.1} parent=0 // pred_check
    _
  $region7: #{conv_attn_2tower.1} parent=0 // pred_check_branch
    %19 = sbr.rel (0) target = $region9
  $region8: #{conv_attn_2tower.1} parent=0 // pred_region
    _
  $region9: #{conv_attn_2tower.1} parent=0 // pred_fallthru
    _
  %v20 = vld [vmem:[%s1] sm:$0xff]
  %v21 = vld [vmem:[%s1 + $0x8] sm:$0xff]
  %v22 = vld [vmem:[%s1 + $0x10] sm:$0xff]
  %v23 = vld [vmem:[%s1 + $0x18] sm:$0xff]
  %v24 = vld [vmem:[%s2] sm:$0xff]
  %v25 = vld [vmem:[%s2 + $0x8] sm:$0x1f]
  %vm26 = vcmask 105472
  %v28 = vsel %vm26, %v20, 0
  %v31 = vsel %vm26, %v21, 0
  %v34 = vsel %vm26, %v22, 0
  %v37 = vsel %vm26, %v23, 0
  %vm39 = vcmask 1044480
  %v41 = vsel %vm39, %v25, 0
  %43 = vmatprep.subr.mxu0 0.0
  %44 = vmatpush1.msra.mxu0 %v24
  %45 = vmatprep.subr.mxu0 0.0
  %46 = vmatpush1.msra.mxu0 %v41
  %47 = vmatprep.subr.mxu0 0.0
  %48 = vmatpush1.msra.mxu0 0.0
  %49 = vmatprep.subr.mxu0 0.0
  %50 = vmatpush1.msra.mxu0 0.0
  %51 = vmatprep.subr.mxu0 0.0
  %52 = vmatpush1.msra.mxu0 0.0
  %53 = vmatprep.subr.mxu0 0.0
  %54 = vmatpush1.msra.mxu0 0.0
  %55 = vmatprep.subr.mxu0 0.0
  %56 = vmatpush1.msra.mxu0 0.0
  %57 = vmatprep.subr.mxu0 0.0
  %58 = vmatpush1.msra.mxu0 0.0
  %59 = vmatprep.subr.mxu0 0.0
  %60 = vmatpush1.msra.mxu0 0.0
  %61 = vmatprep.subr.mxu0 0.0
  %62 = vmatpush1.msra.mxu0 0.0
  %63 = vmatprep.subr.mxu0 0.0
  %64 = vmatpush1.msra.mxu0 0.0
  %65 = vmatprep.subr.mxu0 0.0
  %66 = vmatpush1.msra.mxu0 0.0
  %67 = vmatprep.subr.mxu0 0.0
  %68 = vmatpush1.msra.mxu0 0.0
  %69 = vmatprep.subr.mxu0 0.0
  %70 = vmatpush1.msra.mxu0 0.0
  %71 = vmatprep.subr.mxu0 0.0
  %72 = vmatpush1.msra.mxu0 0.0
  %73 = vmatprep.subr.mxu0 0.0
  %74 = vmatpush1.msra.mxu0 0.0
  %75 = vmatprep.subr.mxu0 0.0
  %76 = vmatpush1.msra.mxu0 0.0
  %77 = vmatprep.subr.mxu0 0.0
  %78 = vmatpush1.msra.mxu0 0.0
  %79 = vmatprep.subr.mxu0 0.0
  %80 = vmatpush1.msra.mxu0 0.0
  %81 = vmatprep.subr.mxu0 0.0
  %82 = vmatpush1.msra.mxu0 0.0
  %83 = vmatprep.subr.mxu0 0.0
  %84 = vmatpush1.msra.mxu0 0.0
  %85 = vmatprep.subr.mxu0 0.0
  %86 = vmatpush1.msra.mxu0 0.0
  %87 = vmatprep.subr.mxu0 0.0
  %88 = vmatpush1.msra.mxu0 0.0
  %89 = vmatprep.subr.mxu0 0.0
  %90 = vmatpush1.msra.mxu0 0.0
  %91 = vmatprep.subr.mxu0 0.0
  %92 = vmatpush1.msra.mxu0 0.0
  %93 = vmatprep.subr.mxu0 0.0
  %94 = vmatpush1.msra.mxu0 0.0
  %95 = vmatprep.subr.mxu0 0.0
  %96 = vmatpush1.msra.mxu0 0.0
  %97 = vmatprep.subr.mxu0 0.0
  %98 = vmatpush1.msra.mxu0 0.0
  %99 = vmatprep.subr.mxu0 0.0
  %100 = vmatpush1.msra.mxu0 0.0
  %101 = vmatprep.subr.mxu0 0.0
  %102 = vmatpush1.msra.mxu0 0.0
  %103 = vmatprep.subr.mxu0 0.0
  %104 = vmatpush1.msra.mxu0 0.0
  %105 = vmatprep.subr.mxu0 0.0
  %106 = vmatpush1.msra.mxu0 0.0
  %107 = vmatprep.mubr.f32.mxu0 0.0
  %108 = vmatmul.mubr.f32.gmra.mrb[0].mxu0 %v28
  %v109 = vpop.f32.mrb[0].mxu0
  %v110 = vadd.f32 0.0, %v109
  %v111 = vpop.f32.mrb[0].mxu0
  %112 = vmatprep.mubr.f32.mxu0 0.0
  %113 = vmatmul.mubr.f32.gmra.mrb[0].mxu0 %v31
  %v114 = vpop.f32.mrb[0].mxu0
  %v115 = vadd.f32 0.0, %v114
  %v116 = vpop.f32.mrb[0].mxu0
  %117 = vmatprep.mubr.f32.mxu0 0.0
  %118 = vmatmul.mubr.f32.gmra.mrb[0].mxu0 %v34
  %v119 = vpop.f32.mrb[0].mxu0
  %v120 = vadd.f32 0.0, %v119
  %v121 = vpop.f32.mrb[0].mxu0
  %122 = vmatprep.mubr.f32.mxu0 0.0
  %123 = vmatmul.mubr.f32.gmra.mrb[0].mxu0 %v37
  %v124 = vpop.f32.mrb[0].mxu0
  %v125 = vadd.f32 0.0, %v124
  %v126 = vpop.f32.mrb[0].mxu0
  %127 = vdwg.mxu0
  %v128 = vmax.f32 %v110, 0.0
  %v129 = vmax.f32 %v115, 0.0
  %v130 = vmax.f32 %v120, 0.0
  %v131 = vmax.f32 %v125, 0.0
  %v132 = vlaneseq
  %v133 = vshrl.u32 %v132, 7
  %v134 = vadd.s32 %v133, 8
  %v135 = vadd.s32 %v133, 16
  %v136 = vadd.s32 %v133, 24
  %v137 = vlaneseq
  %v138 = vand.u32 %v137, 127
  %v139 = vand.u32 %v133, 4294967280
  %v140 = vand.u32 %v134, 4294967280
  %v141 = vand.u32 %v135, 4294967280
  %v142 = vand.u32 %v136, 4294967280
  %v143 = vand.u32 %v138, 4294967280
  %vm144 = vcmp.eq.s32.totalorder %v139, %v143
  %vm145 = vcmp.eq.s32.totalorder %v140, %v143
  %vm146 = vcmp.eq.s32.totalorder %v141, %v143
  %vm147 = vcmp.eq.s32.totalorder %v142, %v143
  %vm148 = vcmp.le.s32.totalorder %v138, %v133
  %vm149 = vcmp.le.s32.totalorder %v138, %v134
  %vm150 = vcmp.le.s32.totalorder %v138, %v135
  %vm151 = vcmp.le.s32.totalorder %v138, %v136
  %vm152 = vmand %vm144, %vm148
  %vm153 = vmand %vm145, %vm149
  %vm154 = vmand %vm146, %vm150
  %vm155 = vmand %vm147, %vm151
  %v156 = vsel %vm152, 0.0, -1e+09
  %v157 = vsel %vm153, 0.0, -1e+09
  %v158 = vsel %vm154, 0.0, -1e+09
  %v159 = vsel %vm155, 0.0, -1e+09
  %v160 = vsub.s32 %v133, %v139
  %v161 = vsub.s32 %v134, %v140
  %v162 = vsub.s32 %v135, %v141
  %v163 = vsub.s32 %v136, %v142
  %vm164 = vcmp.eq.s32.totalorder %v139, 0
  %vm165 = vcmp.eq.s32.totalorder %v140, 0
  %vm166 = vcmp.eq.s32.totalorder %v141, 0
  %vm167 = vcmp.eq.s32.totalorder %v142, 0
  %s168 = sld [smem:[#allocation3]]
  %v169 = vstv %s168
  %v170 = vsel %vm164, %v169, 0
  %v171 = vsel %vm165, %v169, 0
  %v172 = vsel %vm166, %v169, 0
  %v173 = vsel %vm167, %v169, 0
  %vm174 = vcmp.eq.s32.totalorder %v139, 16
  %vm175 = vcmp.eq.s32.totalorder %v140, 16
  %vm176 = vcmp.eq.s32.totalorder %v141, 16
  %vm177 = vcmp.eq.s32.totalorder %v142, 16
  %s178 = sld [smem:[#allocation3 + $0x1]]
  %v179 = vstv %s178
  %v180 = vsel %vm174, %v179, %v170
  %v181 = vsel %vm175, %v179, %v171
  %v182 = vsel %vm176, %v179, %v172
  %v183 = vsel %vm177, %v179, %v173
  %vm184 = vcmp.lt.s32.totalorder %v160, %v180
  %vm185 = vcmp.lt.s32.totalorder %v161, %v181
  %vm186 = vcmp.lt.s32.totalorder %v162, %v182
  %vm187 = vcmp.lt.s32.totalorder %v163, %v183
  %192 = vrot.lane.b32.xlu0 %v110, 112
  %v193 = vpop.permute.xlu0 %192
  %194 = vrot.lane.b32.xlu0 %v115, 112
  %v195 = vpop.permute.xlu0 %194
  %196 = vrot.lane.b32.xlu0 %v120, 112
  %v197 = vpop.permute.xlu0 %196
  %198 = vrot.lane.b32.xlu0 %v125, 112
  %v199 = vpop.permute.xlu0 %198
  %vm200 = vcmask 64512
  %v201 = vsel %vm200, %v110, 0
  %v203 = vsel %vm200, %v115, 0
  %v205 = vsel %vm200, %v120, 0
  %v207 = vsel %vm200, %v125, 0
  %v209 = vsel %vm200, %v193, 0
  %v211 = vsel %vm200, %v195, 0
  %v213 = vsel %vm200, %v197, 0
  %v215 = vsel %vm200, %v199, 0
  %217 = vmatprep.subr.mxu0 0.0
  %218 = vmatpush1.xpose.msra.mxu0 %v209
  %219 = vmatprep.subr.mxu0 0.0
  %220 = vmatpush1.xpose.msra.mxu0 %v211
  %221 = vmatprep.subr.mxu0 0.0
  %222 = vmatpush1.xpose.msra.mxu0 %v213
  %223 = vmatprep.subr.mxu0 0.0
  %224 = vmatpush1.xpose.msra.mxu0 %v215
  %225 = vmatprep.subr.mxu0 0.0
  %226 = vmatpush1.xpose.msra.mxu0 0.0
  %227 = vmatprep.subr.mxu0 0.0
  %228 = vmatpush1.xpose.msra.mxu0 0.0
  %229 = vmatprep.subr.mxu0 0.0
  %230 = vmatpush1.xpose.msra.mxu0 0.0
  %231 = vmatprep.subr.mxu0 0.0
  %232 = vmatpush1.xpose.msra.mxu0 0.0
  %233 = vmatprep.subr.mxu0 0.0
  %234 = vmatpush1.xpose.msra.mxu0 0.0
  %235 = vmatprep.subr.mxu0 0.0
  %236 = vmatpush1.xpose.msra.mxu0 0.0
  %237 = vmatprep.subr.mxu0 0.0
  %238 = vmatpush1.xpose.msra.mxu0 0.0
  %239 = vmatprep.subr.mxu0 0.0
  %240 = vmatpush1.xpose.msra.mxu0 0.0
  %241 = vmatprep.subr.mxu0 0.0
  %242 = vmatpush1.xpose.msra.mxu0 0.0
  %243 = vmatprep.subr.mxu0 0.0
  %244 = vmatpush1.xpose.msra.mxu0 0.0
  %245 = vmatprep.subr.mxu0 0.0
  %246 = vmatpush1.xpose.msra.mxu0 0.0
  %247 = vmatprep.subr.mxu0 0.0
  %248 = vmatpush1.xpose.msra.mxu0 0.0
  %249 = vmatprep.subr.mxu0 0.0
  %250 = vmatpush1.xpose.msra.mxu0 0.0
  %251 = vmatprep.subr.mxu0 0.0
  %252 = vmatpush1.xpose.msra.mxu0 0.0
  %253 = vmatprep.subr.mxu0 0.0
  %254 = vmatpush1.xpose.msra.mxu0 0.0
  %255 = vmatprep.subr.mxu0 0.0
  %256 = vmatpush1.xpose.msra.mxu0 0.0
  %257 = vmatprep.subr.mxu0 0.0
  %258 = vmatpush1.xpose.msra.mxu0 0.0
  %259 = vmatprep.subr.mxu0 0.0
  %260 = vmatpush1.xpose.msra.mxu0 0.0
  %261 = vmatprep.subr.mxu0 0.0
  %262 = vmatpush1.xpose.msra.mxu0 0.0
  %263 = vmatprep.subr.mxu0 0.0
  %264 = vmatpush1.xpose.msra.mxu0 0.0
  %265 = vmatprep.subr.mxu0 0.0
  %266 = vmatpush1.xpose.msra.mxu0 0.0
  %267 = vmatprep.subr.mxu0 0.0
  %268 = vmatpush1.xpose.msra.mxu0 0.0
  %269 = vmatprep.subr.mxu0 0.0
  %270 = vmatpush1.xpose.msra.mxu0 0.0
  %271 = vmatprep.subr.mxu0 0.0
  %272 = vmatpush1.xpose.msra.mxu0 0.0
  %273 = vmatprep.subr.mxu0 0.0
  %274 = vmatpush1.xpose.msra.mxu0 0.0
  %275 = vmatprep.subr.mxu0 0.0
  %276 = vmatpush1.xpose.msra.mxu0 0.0
  %277 = vmatprep.subr.mxu0 0.0
  %278 = vmatpush1.xpose.msra.mxu0 0.0
  %279 = vmatprep.subr.mxu0 0.0
  %280 = vmatpush1.xpose.msra.mxu0 0.0
  %281 = vmatprep.mubr.f32.mxu0 0.0
  %282 = vmatmul.mubr.f32.gmra.mrb[0].mxu0 %v201
  %v283 = vpop.f32.mrb[0].mxu0
  %v284 = vadd.f32 %v156, %v283
  %v285 = vpop.f32.mrb[0].mxu0
  %286 = vmatprep.mubr.f32.mxu0 0.0
  %287 = vmatmul.mubr.f32.gmra.mrb[0].mxu0 %v203
  %v288 = vpop.f32.mrb[0].mxu0
  %v289 = vadd.f32 %v157, %v288
  %v290 = vpop.f32.mrb[0].mxu0
  %291 = vmatprep.mubr.f32.mxu0 0.0
  %292 = vmatmul.mubr.f32.gmra.mrb[0].mxu0 %v205
  %v293 = vpop.f32.mrb[0].mxu0
  %v294 = vadd.f32 %v158, %v293
  %v295 = vpop.f32.mrb[0].mxu0
  %296 = vmatprep.mubr.f32.mxu0 0.0
  %297 = vmatmul.mubr.f32.gmra.mrb[0].mxu0 %v207
  %v298 = vpop.f32.mrb[0].mxu0
  %v299 = vadd.f32 %v159, %v298
  %v300 = vpop.f32.mrb[0].mxu0
  %301 = vdwg.mxu0
  %vm302 = vcmask 261120
  %v303 = vsel %vm302, %v284, -inf
  %304 = vmax.xlane.f32.xlu0 %v303
  %v305 = vpop.xlane.xlu0 %304
  %v306 = vsel %vm302, %v289, -inf
  %307 = vmax.xlane.f32.xlu0 %v306
  %v308 = vpop.xlane.xlu0 %307
  %v309 = vsel %vm302, %v294, -inf
  %310 = vmax.xlane.f32.xlu0 %v309
  %v311 = vpop.xlane.xlu0 %310
  %v312 = vsel %vm302, %v299, -inf
  %313 = vmax.xlane.f32.xlu0 %v312
  %v314 = vpop.xlane.xlu0 %313
  %v315 = vsub.f32 %v284, %v305
  %v316 = vsub.f32 %v289, %v308
  %v317 = vsub.f32 %v294, %v311
  %v318 = vsub.f32 %v299, %v314
  %v319 = vmul.f32 %v315, 1.442695
  %v320 = vpow.pop %v319
  %v321 = vmul.f32 %v316, 1.442695
  %v322 = vpow.pop %v321
  %v323 = vmul.f32 %v317, 1.442695
  %v324 = vpow.pop %v323
  %v325 = vmul.f32 %v318, 1.442695
  %v326 = vpow.pop %v325
  %v327 = vsel %vm302, %v320, 0.0
  %328 = vadd.xlane.f32.xlu0 %v327
  %v329 = vpop.xlane.xlu0 %328
  %v330 = vsel %vm302, %v322, 0.0
  %331 = vadd.xlane.f32.xlu0 %v330
  %v332 = vpop.xlane.xlu0 %331
  %v333 = vsel %vm302, %v324, 0.0
  %334 = vadd.xlane.f32.xlu0 %v333
  %v335 = vpop.xlane.xlu0 %334
  %v336 = vsel %vm302, %v326, 0.0
  %337 = vadd.xlane.f32.xlu0 %v336
  %v338 = vpop.xlane.xlu0 %337
  %v339 = vrcp.pop %v329
  %v340 = vrcp.pop %v332
  %v341 = vrcp.pop %v335
  %v342 = vrcp.pop %v338
  %v343 = vmul.f32 %v320, %v339
  %v344 = vmul.f32 %v322, %v340
  %v345 = vmul.f32 %v324, %v341
  %v346 = vmul.f32 %v326, %v342
  %v347 = vsel %vm184, 1, 0
  %v348 = vsel %vm185, 1, 0
  %v349 = vsel %vm186, 1, 0
  %v350 = vsel %vm187, 1, 0
  %vm351 = vcmp.eq.s32.totalorder %v347, 1
  %vm352 = vcmp.eq.s32.totalorder %v348, 1
  %vm353 = vcmp.eq.s32.totalorder %v349, 1
  %vm354 = vcmp.eq.s32.totalorder %v350, 1
  %v355 = vsel %vm351, %v343, 0.0
  %v356 = vsel %vm352, %v344, 0.0
  %v357 = vsel %vm353, %v345, 0.0
  %v358 = vsel %vm354, %v346, 0.0
  %363 = vrot.lane.b32.xlu0 %v128, 96
  %v364 = vpop.permute.xlu0 %363
  %365 = vrot.lane.b32.xlu0 %v129, 96
  %v366 = vpop.permute.xlu0 %365
  %367 = vrot.lane.b32.xlu0 %v130, 96
  %v368 = vpop.permute.xlu0 %367
  %369 = vrot.lane.b32.xlu0 %v131, 96
  %v370 = vpop.permute.xlu0 %369
  %v376 = vsel %vm302, %v355, 0
  %v379 = vsel %vm302, %v356, 0
  %v382 = vsel %vm302, %v357, 0
  %v385 = vsel %vm302, %v358, 0
  %387 = vmatprep.subr.mxu0 0.0
  %388 = vmatpush1.msra.mxu0 %v364
  %389 = vmatprep.subr.mxu0 0.0
  %390 = vmatpush1.msra.mxu0 %v366
  %391 = vmatprep.subr.mxu0 0.0
  %392 = vmatpush1.msra.mxu0 %v368
  %393 = vmatprep.subr.mxu0 0.0
  %394 = vmatpush1.msra.mxu0 %v370
  %395 = vmatprep.subr.mxu0 0.0
  %396 = vmatpush1.msra.mxu0 0.0
  %397 = vmatprep.subr.mxu0 0.0
  %398 = vmatpush1.msra.mxu0 0.0
  %399 = vmatprep.subr.mxu0 0.0
  %400 = vmatpush1.msra.mxu0 0.0
  %401 = vmatprep.subr.mxu0 0.0
  %402 = vmatpush1.msra.mxu0 0.0
  %403 = vmatprep.subr.mxu0 0.0
  %404 = vmatpush1.msra.mxu0 0.0
  %405 = vmatprep.subr.mxu0 0.0
  %406 = vmatpush1.msra.mxu0 0.0
  %407 = vmatprep.subr.mxu0 0.0
  %408 = vmatpush1.msra.mxu0 0.0
  %409 = vmatprep.subr.mxu0 0.0
  %410 = vmatpush1.msra.mxu0 0.0
  %411 = vmatprep.subr.mxu0 0.0
  %412 = vmatpush1.msra.mxu0 0.0
  %413 = vmatprep.subr.mxu0 0.0
  %414 = vmatpush1.msra.mxu0 0.0
  %415 = vmatprep.subr.mxu0 0.0
  %416 = vmatpush1.msra.mxu0 0.0
  %417 = vmatprep.subr.mxu0 0.0
  %418 = vmatpush1.msra.mxu0 0.0
  %419 = vmatprep.subr.mxu0 0.0
  %420 = vmatpush1.msra.mxu0 0.0
  %421 = vmatprep.subr.mxu0 0.0
  %422 = vmatpush1.msra.mxu0 0.0
  %423 = vmatprep.subr.mxu0 0.0
  %424 = vmatpush1.msra.mxu0 0.0
  %425 = vmatprep.subr.mxu0 0.0
  %426 = vmatpush1.msra.mxu0 0.0
  %427 = vmatprep.subr.mxu0 0.0
  %428 = vmatpush1.msra.mxu0 0.0
  %429 = vmatprep.subr.mxu0 0.0
  %430 = vmatpush1.msra.mxu0 0.0
  %431 = vmatprep.subr.mxu0 0.0
  %432 = vmatpush1.msra.mxu0 0.0
  %433 = vmatprep.subr.mxu0 0.0
  %434 = vmatpush1.msra.mxu0 0.0
  %435 = vmatprep.subr.mxu0 0.0
  %436 = vmatpush1.msra.mxu0 0.0
  %437 = vmatprep.subr.mxu0 0.0
  %438 = vmatpush1.msra.mxu0 0.0
  %439 = vmatprep.subr.mxu0 0.0
  %440 = vmatpush1.msra.mxu0 0.0
  %441 = vmatprep.subr.mxu0 0.0
  %442 = vmatpush1.msra.mxu0 0.0
  %443 = vmatprep.subr.mxu0 0.0
  %444 = vmatpush1.msra.mxu0 0.0
  %445 = vmatprep.subr.mxu0 0.0
  %446 = vmatpush1.msra.mxu0 0.0
  %447 = vmatprep.subr.mxu0 0.0
  %448 = vmatpush1.msra.mxu0 0.0
  %449 = vmatprep.subr.mxu0 0.0
  %450 = vmatpush1.msra.mxu0 0.0
  %451 = vmatprep.mubr.f32.mxu0 0.0
  %452 = vmatmul.mubr.f32.gmra.mrb[0].mxu0 %v376
  %v453 = vpop.f32.mrb[0].mxu0
  %v454 = vadd.f32 0.0, %v453
  %v455 = vpop.f32.mrb[0].mxu0
  %456 = vmatprep.mubr.f32.mxu0 0.0
  %457 = vmatmul.mubr.f32.gmra.mrb[0].mxu0 %v379
  %v458 = vpop.f32.mrb[0].mxu0
  %v459 = vadd.f32 0.0, %v458
  %v460 = vpop.f32.mrb[0].mxu0
  %461 = vmatprep.mubr.f32.mxu0 0.0
  %462 = vmatmul.mubr.f32.gmra.mrb[0].mxu0 %v382
  %v463 = vpop.f32.mrb[0].mxu0
  %v464 = vadd.f32 0.0, %v463
  %v465 = vpop.f32.mrb[0].mxu0
  %466 = vmatprep.mubr.f32.mxu0 0.0
  %467 = vmatmul.mubr.f32.gmra.mrb[0].mxu0 %v385
  %v468 = vpop.f32.mrb[0].mxu0
  %v469 = vadd.f32 0.0, %v468
  %v470 = vpop.f32.mrb[0].mxu0
  %471 = vdwg.mxu0
  %472 = vrot.lane.b32.xlu0 %v357, 112
  %v473 = vpop.permute.xlu0 %472
  %474 = vrot.lane.b32.xlu0 %v358, 112
  %v475 = vpop.permute.xlu0 %474
  %478 = vrot.lane.b32.xlu0 %v110, 120
  %v479 = vpop.permute.xlu0 %478
  %480 = vrot.lane.b32.xlu0 %v115, 120
  %v481 = vpop.permute.xlu0 %480
  %482 = vrot.lane.b32.xlu0 %v120, 120
  %v483 = vpop.permute.xlu0 %482
  %484 = vrot.lane.b32.xlu0 %v125, 120
  %v485 = vpop.permute.xlu0 %484
  %486 = vrot.lane.b32.xlu0 %v110, 104
  %v487 = vpop.permute.xlu0 %486
  %488 = vrot.lane.b32.xlu0 %v115, 104
  %v489 = vpop.permute.xlu0 %488
  %490 = vrot.lane.b32.xlu0 %v120, 104
  %v491 = vpop.permute.xlu0 %490
  %492 = vrot.lane.b32.xlu0 %v125, 104
  %v493 = vpop.permute.xlu0 %492
  %v494 = vsel %vm200, %v479, 0
  %v496 = vsel %vm200, %v481, 0
  %v498 = vsel %vm200, %v483, 0
  %v500 = vsel %vm200, %v485, 0
  %v502 = vsel %vm200, %v487, 0
  %v504 = vsel %vm200, %v489, 0
  %v506 = vsel %vm200, %v491, 0
  %v508 = vsel %vm200, %v493, 0
  %510 = vmatprep.subr.mxu0 0.0
  %511 = vmatpush1.xpose.msra.mxu0 %v502
  %512 = vmatprep.subr.mxu0 0.0
  %513 = vmatpush1.xpose.msra.mxu0 %v504
  %514 = vmatprep.subr.mxu0 0.0
  %515 = vmatpush1.xpose.msra.mxu0 %v506
  %516 = vmatprep.subr.mxu0 0.0
  %517 = vmatpush1.xpose.msra.mxu0 %v508
  %518 = vmatprep.subr.mxu0 0.0
  %519 = vmatpush1.xpose.msra.mxu0 0.0
  %520 = vmatprep.subr.mxu0 0.0
  %521 = vmatpush1.xpose.msra.mxu0 0.0
  %522 = vmatprep.subr.mxu0 0.0
  %523 = vmatpush1.xpose.msra.mxu0 0.0
  %524 = vmatprep.subr.mxu0 0.0
  %525 = vmatpush1.xpose.msra.mxu0 0.0
  %526 = vmatprep.subr.mxu0 0.0
  %527 = vmatpush1.xpose.msra.mxu0 0.0
  %528 = vmatprep.subr.mxu0 0.0
  %529 = vmatpush1.xpose.msra.mxu0 0.0
  %530 = vmatprep.subr.mxu0 0.0
  %531 = vmatpush1.xpose.msra.mxu0 0.0
  %532 = vmatprep.subr.mxu0 0.0
  %533 = vmatpush1.xpose.msra.mxu0 0.0
  %534 = vmatprep.subr.mxu0 0.0
  %535 = vmatpush1.xpose.msra.mxu0 0.0
  %536 = vmatprep.subr.mxu0 0.0
  %537 = vmatpush1.xpose.msra.mxu0 0.0
  %538 = vmatprep.subr.mxu0 0.0
  %539 = vmatpush1.xpose.msra.mxu0 0.0
  %540 = vmatprep.subr.mxu0 0.0
  %541 = vmatpush1.xpose.msra.mxu0 0.0
  %542 = vmatprep.subr.mxu0 0.0
  %543 = vmatpush1.xpose.msra.mxu0 0.0
  %544 = vmatprep.subr.mxu0 0.0
  %545 = vmatpush1.xpose.msra.mxu0 0.0
  %546 = vmatprep.subr.mxu0 0.0
  %547 = vmatpush1.xpose.msra.mxu0 0.0
  %548 = vmatprep.subr.mxu0 0.0
  %549 = vmatpush1.xpose.msra.mxu0 0.0
  %550 = vmatprep.subr.mxu0 0.0
  %551 = vmatpush1.xpose.msra.mxu0 0.0
  %552 = vmatprep.subr.mxu0 0.0
  %553 = vmatpush1.xpose.msra.mxu0 0.0
  %554 = vmatprep.subr.mxu0 0.0
  %555 = vmatpush1.xpose.msra.mxu0 0.0
  %556 = vmatprep.subr.mxu0 0.0
  %557 = vmatpush1.xpose.msra.mxu0 0.0
  %558 = vmatprep.subr.mxu0 0.0
  %559 = vmatpush1.xpose.msra.mxu0 0.0
  %560 = vmatprep.subr.mxu0 0.0
  %561 = vmatpush1.xpose.msra.mxu0 0.0
  %562 = vmatprep.subr.mxu0 0.0
  %563 = vmatpush1.xpose.msra.mxu0 0.0
  %564 = vmatprep.subr.mxu0 0.0
  %565 = vmatpush1.xpose.msra.mxu0 0.0
  %566 = vmatprep.subr.mxu0 0.0
  %567 = vmatpush1.xpose.msra.mxu0 0.0
  %568 = vmatprep.subr.mxu0 0.0
  %569 = vmatpush1.xpose.msra.mxu0 0.0
  %570 = vmatprep.subr.mxu0 0.0
  %571 = vmatpush1.xpose.msra.mxu0 0.0
  %572 = vmatprep.subr.mxu0 0.0
  %573 = vmatpush1.xpose.msra.mxu0 0.0
  %574 = vmatprep.mubr.f32.mxu0 0.0
  %575 = vmatmul.mubr.f32.gmra.mrb[0].mxu0 %v494
  %v576 = vpop.f32.mrb[0].mxu0
  %v577 = vadd.f32 %v156, %v576
  %v578 = vpop.f32.mrb[0].mxu0
  %579 = vmatprep.mubr.f32.mxu0 0.0
  %580 = vmatmul.mubr.f32.gmra.mrb[0].mxu0 %v496
  %v581 = vpop.f32.mrb[0].mxu0
  %v582 = vadd.f32 %v157, %v581
  %v583 = vpop.f32.mrb[0].mxu0
  %584 = vmatprep.mubr.f32.mxu0 0.0
  %585 = vmatmul.mubr.f32.gmra.mrb[0].mxu0 %v498
  %v586 = vpop.f32.mrb[0].mxu0
  %v587 = vadd.f32 %v158, %v586
  %v588 = vpop.f32.mrb[0].mxu0
  %589 = vmatprep.mubr.f32.mxu0 0.0
  %590 = vmatmul.mubr.f32.gmra.mrb[0].mxu0 %v500
  %v591 = vpop.f32.mrb[0].mxu0
  %v592 = vadd.f32 %v159, %v591
  %v593 = vpop.f32.mrb[0].mxu0
  %594 = vdwg.mxu0
  %v595 = vsel %vm302, %v577, -inf
  %596 = vmax.xlane.f32.xlu0 %v595
  %v597 = vpop.xlane.xlu0 %596
  %v598 = vsel %vm302, %v582, -inf
  %599 = vmax.xlane.f32.xlu0 %v598
  %v600 = vpop.xlane.xlu0 %599
  %v601 = vsel %vm302, %v587, -inf
  %602 = vmax.xlane.f32.xlu0 %v601
  %v603 = vpop.xlane.xlu0 %602
  %v604 = vsel %vm302, %v592, -inf
  %605 = vmax.xlane.f32.xlu0 %v604
  %v606 = vpop.xlane.xlu0 %605
  %v607 = vsub.f32 %v577, %v597
  %v608 = vsub.f32 %v582, %v600
  %v609 = vsub.f32 %v587, %v603
  %v610 = vsub.f32 %v592, %v606
  %v611 = vmul.f32 %v607, 1.442695
  %v612 = vpow.pop %v611
  %v613 = vmul.f32 %v608, 1.442695
  %v614 = vpow.pop %v613
  %v615 = vmul.f32 %v609, 1.442695
  %v616 = vpow.pop %v615
  %v617 = vmul.f32 %v610, 1.442695
  %v618 = vpow.pop %v617
  %v619 = vsel %vm302, %v612, 0.0
  %620 = vadd.xlane.f32.xlu0 %v619
  %v621 = vpop.xlane.xlu0 %620
  %v622 = vsel %vm302, %v614, 0.0
  %623 = vadd.xlane.f32.xlu0 %v622
  %v624 = vpop.xlane.xlu0 %623
  %v625 = vsel %vm302, %v616, 0.0
  %626 = vadd.xlane.f32.xlu0 %v625
  %v627 = vpop.xlane.xlu0 %626
  %v628 = vsel %vm302, %v618, 0.0
  %629 = vadd.xlane.f32.xlu0 %v628
  %v630 = vpop.xlane.xlu0 %629
  %v631 = vrcp.pop %v621
  %v632 = vrcp.pop %v624
  %v633 = vrcp.pop %v627
  %v634 = vrcp.pop %v630
  %v635 = vmul.f32 %v612, %v631
  %v636 = vmul.f32 %v614, %v632
  %v637 = vmul.f32 %v616, %v633
  %v638 = vmul.f32 %v618, %v634
  %v639 = vsel %vm351, %v635, 0.0
  %v640 = vsel %vm352, %v636, 0.0
  %v641 = vsel %vm353, %v637, 0.0
  %v642 = vsel %vm354, %v638, 0.0
  %643 = vrot.lane.b32.xlu0 %v128, 88
  %v644 = vpop.permute.xlu0 %643
  %645 = vrot.lane.b32.xlu0 %v129, 88
  %v646 = vpop.permute.xlu0 %645
  %647 = vrot.lane.b32.xlu0 %v130, 88
  %v648 = vpop.permute.xlu0 %647
  %649 = vrot.lane.b32.xlu0 %v131, 88
  %v650 = vpop.permute.xlu0 %649
  %v656 = vsel %vm302, %v639, 0
  %v659 = vsel %vm302, %v640, 0
  %v662 = vsel %vm302, %v641, 0
  %v665 = vsel %vm302, %v642, 0
  %667 = vmatprep.subr.mxu0 0.0
  %668 = vmatpush1.msra.mxu0 %v644
  %669 = vmatprep.subr.mxu0 0.0
  %670 = vmatpush1.msra.mxu0 %v646
  %671 = vmatprep.subr.mxu0 0.0
  %672 = vmatpush1.msra.mxu0 %v648
  %673 = vmatprep.subr.mxu0 0.0
  %674 = vmatpush1.msra.mxu0 %v650
  %675 = vmatprep.subr.mxu0 0.0
  %676 = vmatpush1.msra.mxu0 0.0
  %677 = vmatprep.subr.mxu0 0.0
  %678 = vmatpush1.msra.mxu0 0.0
  %679 = vmatprep.subr.mxu0 0.0
  %680 = vmatpush1.msra.mxu0 0.0
  %681 = vmatprep.subr.mxu0 0.0
  %682 = vmatpush1.msra.mxu0 0.0
  %683 = vmatprep.subr.mxu0 0.0
  %684 = vmatpush1.msra.mxu0 0.0
  %685 = vmatprep.subr.mxu0 0.0
  %686 = vmatpush1.msra.mxu0 0.0
  %687 = vmatprep.subr.mxu0 0.0
  %688 = vmatpush1.msra.mxu0 0.0
  %689 = vmatprep.subr.mxu0 0.0
  %690 = vmatpush1.msra.mxu0 0.0
  %691 = vmatprep.subr.mxu0 0.0
  %692 = vmatpush1.msra.mxu0 0.0
  %693 = vmatprep.subr.mxu0 0.0
  %694 = vmatpush1.msra.mxu0 0.0
  %695 = vmatprep.subr.mxu0 0.0
  %696 = vmatpush1.msra.mxu0 0.0
  %697 = vmatprep.subr.mxu0 0.0
  %698 = vmatpush1.msra.mxu0 0.0
  %699 = vmatprep.subr.mxu0 0.0
  %700 = vmatpush1.msra.mxu0 0.0
  %701 = vmatprep.subr.mxu0 0.0
  %702 = vmatpush1.msra.mxu0 0.0
  %703 = vmatprep.subr.mxu0 0.0
  %704 = vmatpush1.msra.mxu0 0.0
  %705 = vmatprep.subr.mxu0 0.0
  %706 = vmatpush1.msra.mxu0 0.0
  %707 = vmatprep.subr.mxu0 0.0
  %708 = vmatpush1.msra.mxu0 0.0
  %709 = vmatprep.subr.mxu0 0.0
  %710 = vmatpush1.msra.mxu0 0.0
  %711 = vmatprep.subr.mxu0 0.0
  %712 = vmatpush1.msra.mxu0 0.0
  %713 = vmatprep.subr.mxu0 0.0
  %714 = vmatpush1.msra.mxu0 0.0
  %715 = vmatprep.subr.mxu0 0.0
  %716 = vmatpush1.msra.mxu0 0.0
  %717 = vmatprep.subr.mxu0 0.0
  %718 = vmatpush1.msra.mxu0 0.0
  %719 = vmatprep.subr.mxu0 0.0
  %720 = vmatpush1.msra.mxu0 0.0
  %721 = vmatprep.subr.mxu0 0.0
  %722 = vmatpush1.msra.mxu0 0.0
  %723 = vmatprep.subr.mxu0 0.0
  %724 = vmatpush1.msra.mxu0 0.0
  %725 = vmatprep.subr.mxu0 0.0
  %726 = vmatpush1.msra.mxu0 0.0
  %727 = vmatprep.subr.mxu0 0.0
  %728 = vmatpush1.msra.mxu0 0.0
  %729 = vmatprep.subr.mxu0 0.0
  %730 = vmatpush1.msra.mxu0 0.0
  %731 = vmatprep.mubr.f32.mxu0 0.0
  %732 = vmatmul.mubr.f32.gmra.mrb[0].mxu0 %v656
  %v733 = vpop.f32.mrb[0].mxu0
  %v734 = vadd.f32 0.0, %v733
  %v735 = vpop.f32.mrb[0].mxu0
  %736 = vmatprep.mubr.f32.mxu0 0.0
  %737 = vmatmul.mubr.f32.gmra.mrb[0].mxu0 %v659
  %v738 = vpop.f32.mrb[0].mxu0
  %v739 = vadd.f32 0.0, %v738
  %v740 = vpop.f32.mrb[0].mxu0
  %741 = vmatprep.mubr.f32.mxu0 0.0
  %742 = vmatmul.mubr.f32.gmra.mrb[0].mxu0 %v662
  %v743 = vpop.f32.mrb[0].mxu0
  %v744 = vadd.f32 0.0, %v743
  %v745 = vpop.f32.mrb[0].mxu0
  %746 = vmatprep.mubr.f32.mxu0 0.0
  %747 = vmatmul.mubr.f32.gmra.mrb[0].mxu0 %v665
  %v748 = vpop.f32.mrb[0].mxu0
  %v749 = vadd.f32 0.0, %v748
  %v750 = vpop.f32.mrb[0].mxu0
  %751 = vdwg.mxu0
  %752 = vrot.lane.b32.xlu0 %v641, 112
  %v753 = vpop.permute.xlu0 %752
  %754 = vrot.lane.b32.xlu0 %v642, 112
  %v755 = vpop.permute.xlu0 %754
  %760 = vrot.lane.b32.xlu0 %v734, 8
  %v761 = vpop.permute.xlu0 %760
  %762 = vrot.lane.b32.xlu0 %v739, 8
  %v763 = vpop.permute.xlu0 %762
  %764 = vrot.lane.b32.xlu0 %v744, 8
  %v765 = vpop.permute.xlu0 %764
  %766 = vrot.lane.b32.xlu0 %v749, 8
  %v767 = vpop.permute.xlu0 %766
  %v772 = vsel %vm200, %v454, %v761
  %v773 = vsel %vm200, %v459, %v763
  %v774 = vsel %vm200, %v464, %v765
  %v775 = vsel %vm200, %v469, %v767
  %776 = vrot.lane.b32.xlu0 %v639, 16
  %v777 = vpop.permute.xlu0 %776
  %778 = vrot.lane.b32.xlu0 %v640, 16
  %v779 = vpop.permute.xlu0 %778
  %780 = vrot.lane.b32.xlu0 %v753, 16
  %v781 = vpop.permute.xlu0 %780
  %782 = vrot.lane.b32.xlu0 %v755, 16
  %v783 = vpop.permute.xlu0 %782
  %vm788 = vcmask 130048
  %v789 = vsel %vm788, %v355, %v777
  %v790 = vsel %vm788, %v356, %v779
  %v791 = vsel %vm788, %v473, %v781
  %v792 = vsel %vm788, %v475, %v783
  %793 = vst.msk [vmem:[%s4] sm:$0xff] %vm302, %v789
  %794 = vst.msk [vmem:[%s4 + $0x8] sm:$0xff] %vm302, %v790
  %795 = vst.msk [vmem:[%s4 + $0x10] sm:$0xff] %vm302, %v791
  %796 = vst.msk [vmem:[%s4 + $0x18] sm:$0xff] %vm302, %v792
  %v797 = vld [vmem:[%s2 + $0x10] sm:$0xff]
  %v798 = vld [vmem:[%s2 + $0x18] sm:$0xff]
  %v799 = vld [vmem:[%s2 + $0x20] sm:$0x1]
  %v800 = vlaneseq
  %v801 = vshrl.u32 %v800, 7
  %v802 = vsub.s32 0, %v801
  %v803 = vrot.slane %v799, %v802
  %v805 = vsel %vm788, %v772, 0
  %v808 = vsel %vm788, %v773, 0
  %v811 = vsel %vm788, %v774, 0
  %v814 = vsel %vm788, %v775, 0
  %816 = vmatprep.subr.mxu0 0.0
  %817 = vmatpush1.msra.mxu0 %v797
  %818 = vmatprep.subr.mxu0 0.0
  %819 = vmatpush1.msra.mxu0 %v798
  %820 = vmatprep.subr.mxu0 0.0
  %821 = vmatpush1.msra.mxu0 0.0
  %822 = vmatprep.subr.mxu0 0.0
  %823 = vmatpush1.msra.mxu0 0.0
  %824 = vmatprep.subr.mxu0 0.0
  %825 = vmatpush1.msra.mxu0 0.0
  %826 = vmatprep.subr.mxu0 0.0
  %827 = vmatpush1.msra.mxu0 0.0
  %828 = vmatprep.subr.mxu0 0.0
  %829 = vmatpush1.msra.mxu0 0.0
  %830 = vmatprep.subr.mxu0 0.0
  %831 = vmatpush1.msra.mxu0 0.0
  %832 = vmatprep.subr.mxu0 0.0
  %833 = vmatpush1.msra.mxu0 0.0
  %834 = vmatprep.subr.mxu0 0.0
  %835 = vmatpush1.msra.mxu0 0.0
  %836 = vmatprep.subr.mxu0 0.0
  %837 = vmatpush1.msra.mxu0 0.0
  %838 = vmatprep.subr.mxu0 0.0
  %839 = vmatpush1.msra.mxu0 0.0
  %840 = vmatprep.subr.mxu0 0.0
  %841 = vmatpush1.msra.mxu0 0.0
  %842 = vmatprep.subr.mxu0 0.0
  %843 = vmatpush1.msra.mxu0 0.0
  %844 = vmatprep.subr.mxu0 0.0
  %845 = vmatpush1.msra.mxu0 0.0
  %846 = vmatprep.subr.mxu0 0.0
  %847 = vmatpush1.msra.mxu0 0.0
  %848 = vmatprep.subr.mxu0 0.0
  %849 = vmatpush1.msra.mxu0 0.0
  %850 = vmatprep.subr.mxu0 0.0
  %851 = vmatpush1.msra.mxu0 0.0
  %852 = vmatprep.subr.mxu0 0.0
  %853 = vmatpush1.msra.mxu0 0.0
  %854 = vmatprep.subr.mxu0 0.0
  %855 = vmatpush1.msra.mxu0 0.0
  %856 = vmatprep.subr.mxu0 0.0
  %857 = vmatpush1.msra.mxu0 0.0
  %858 = vmatprep.subr.mxu0 0.0
  %859 = vmatpush1.msra.mxu0 0.0
  %860 = vmatprep.subr.mxu0 0.0
  %861 = vmatpush1.msra.mxu0 0.0
  %862 = vmatprep.subr.mxu0 0.0
  %863 = vmatpush1.msra.mxu0 0.0
  %864 = vmatprep.subr.mxu0 0.0
  %865 = vmatpush1.msra.mxu0 0.0
  %866 = vmatprep.subr.mxu0 0.0
  %867 = vmatpush1.msra.mxu0 0.0
  %868 = vmatprep.subr.mxu0 0.0
  %869 = vmatpush1.msra.mxu0 0.0
  %870 = vmatprep.subr.mxu0 0.0
  %871 = vmatpush1.msra.mxu0 0.0
  %872 = vmatprep.subr.mxu0 0.0
  %873 = vmatpush1.msra.mxu0 0.0
  %874 = vmatprep.subr.mxu0 0.0
  %875 = vmatpush1.msra.mxu0 0.0
  %876 = vmatprep.subr.mxu0 0.0
  %877 = vmatpush1.msra.mxu0 0.0
  %878 = vmatprep.subr.mxu0 0.0
  %879 = vmatpush1.msra.mxu0 0.0
  %880 = vmatprep.mubr.f32.mxu0 0.0
  %881 = vmatmul.mubr.f32.gmra.mrb[0].mxu0 %v805
  %v882 = vpop.f32.mrb[0].mxu0
  %v883 = vadd.f32 %v803, %v882
  %v884 = vpop.f32.mrb[0].mxu0
  %885 = vmatprep.mubr.f32.mxu0 0.0
  %886 = vmatmul.mubr.f32.gmra.mrb[0].mxu0 %v808
  %v887 = vpop.f32.mrb[0].mxu0
  %v888 = vadd.f32 %v803, %v887
  %v889 = vpop.f32.mrb[0].mxu0
  %890 = vmatprep.mubr.f32.mxu0 0.0
  %891 = vmatmul.mubr.f32.gmra.mrb[0].mxu0 %v811
  %v892 = vpop.f32.mrb[0].mxu0
  %v893 = vadd.f32 %v803, %v892
  %v894 = vpop.f32.mrb[0].mxu0
  %895 = vmatprep.mubr.f32.mxu0 0.0
  %896 = vmatmul.mubr.f32.gmra.mrb[0].mxu0 %v814
  %v897 = vpop.f32.mrb[0].mxu0
  %v898 = vadd.f32 %v803, %v897
  %v899 = vpop.f32.mrb[0].mxu0
  %900 = vdwg.mxu0
  %v901 = vmax.f32 %v883, 0.0
  %v902 = vmax.f32 %v888, 0.0
  %v903 = vmax.f32 %v893, 0.0
  %v904 = vmax.f32 %v898, 0.0
  %v905 = vld [vmem:[%s2 + $0x28] sm:$0xff]
  %v906 = vld [vmem:[%s2 + $0x30] sm:$0xff]
  %v907 = vld [vmem:[%s2 + $0x38] sm:$0x1]
  %v908 = vlaneseq
  %v909 = vshrl.u32 %v908, 7
  %v910 = vsub.s32 0, %v909
  %v911 = vrot.slane %v907, %v910
  %v913 = vsel %vm788, %v901, 0
  %v916 = vsel %vm788, %v902, 0
  %v919 = vsel %vm788, %v903, 0
  %v922 = vsel %vm788, %v904, 0
  %924 = vmatprep.subr.mxu0 0.0
  %925 = vmatpush1.msra.mxu0 %v905
  %926 = vmatprep.subr.mxu0 0.0
  %927 = vmatpush1.msra.mxu0 %v906
  %928 = vmatprep.subr.mxu0 0.0
  %929 = vmatpush1.msra.mxu0 0.0
  %930 = vmatprep.subr.mxu0 0.0
  %931 = vmatpush1.msra.mxu0 0.0
  %932 = vmatprep.subr.mxu0 0.0
  %933 = vmatpush1.msra.mxu0 0.0
  %934 = vmatprep.subr.mxu0 0.0
  %935 = vmatpush1.msra.mxu0 0.0
  %936 = vmatprep.subr.mxu0 0.0
  %937 = vmatpush1.msra.mxu0 0.0
  %938 = vmatprep.subr.mxu0 0.0
  %939 = vmatpush1.msra.mxu0 0.0
  %940 = vmatprep.subr.mxu0 0.0
  %941 = vmatpush1.msra.mxu0 0.0
  %942 = vmatprep.subr.mxu0 0.0
  %943 = vmatpush1.msra.mxu0 0.0
  %944 = vmatprep.subr.mxu0 0.0
  %945 = vmatpush1.msra.mxu0 0.0
  %946 = vmatprep.subr.mxu0 0.0
  %947 = vmatpush1.msra.mxu0 0.0
  %948 = vmatprep.subr.mxu0 0.0
  %949 = vmatpush1.msra.mxu0 0.0
  %950 = vmatprep.subr.mxu0 0.0
  %951 = vmatpush1.msra.mxu0 0.0
  %952 = vmatprep.subr.mxu0 0.0
  %953 = vmatpush1.msra.mxu0 0.0
  %954 = vmatprep.subr.mxu0 0.0
  %955 = vmatpush1.msra.mxu0 0.0
  %956 = vmatprep.subr.mxu0 0.0
  %957 = vmatpush1.msra.mxu0 0.0
  %958 = vmatprep.subr.mxu0 0.0
  %959 = vmatpush1.msra.mxu0 0.0
  %960 = vmatprep.subr.mxu0 0.0
  %961 = vmatpush1.msra.mxu0 0.0
  %962 = vmatprep.subr.mxu0 0.0
  %963 = vmatpush1.msra.mxu0 0.0
  %964 = vmatprep.subr.mxu0 0.0
  %965 = vmatpush1.msra.mxu0 0.0
  %966 = vmatprep.subr.mxu0 0.0
  %967 = vmatpush1.msra.mxu0 0.0
  %968 = vmatprep.subr.mxu0 0.0
  %969 = vmatpush1.msra.mxu0 0.0
  %970 = vmatprep.subr.mxu0 0.0
  %971 = vmatpush1.msra.mxu0 0.0
  %972 = vmatprep.subr.mxu0 0.0
  %973 = vmatpush1.msra.mxu0 0.0
  %974 = vmatprep.subr.mxu0 0.0
  %975 = vmatpush1.msra.mxu0 0.0
  %976 = vmatprep.subr.mxu0 0.0
  %977 = vmatpush1.msra.mxu0 0.0
  %978 = vmatprep.subr.mxu0 0.0
  %979 = vmatpush1.msra.mxu0 0.0
  %980 = vmatprep.subr.mxu0 0.0
  %981 = vmatpush1.msra.mxu0 0.0
  %982 = vmatprep.subr.mxu0 0.0
  %983 = vmatpush1.msra.mxu0 0.0
  %984 = vmatprep.subr.mxu0 0.0
  %985 = vmatpush1.msra.mxu0 0.0
  %986 = vmatprep.subr.mxu0 0.0
  %987 = vmatpush1.msra.mxu0 0.0
  %988 = vmatprep.mubr.f32.mxu0 0.0
  %989 = vmatmul.mubr.f32.gmra.mrb[0].mxu0 %v913
  %v990 = vpop.f32.mrb[0].mxu0
  %v991 = vadd.f32 %v911, %v990
  %v992 = vpop.f32.mrb[0].mxu0
  %993 = vmatprep.mubr.f32.mxu0 0.0
  %994 = vmatmul.mubr.f32.gmra.mrb[0].mxu0 %v916
  %v995 = vpop.f32.mrb[0].mxu0
  %v996 = vadd.f32 %v911, %v995
  %v997 = vpop.f32.mrb[0].mxu0
  %998 = vmatprep.mubr.f32.mxu0 0.0
  %999 = vmatmul.mubr.f32.gmra.mrb[0].mxu0 %v919
  %v1000 = vpop.f32.mrb[0].mxu0
  %v1001 = vadd.f32 %v911, %v1000
  %v1002 = vpop.f32.mrb[0].mxu0
  %1003 = vmatprep.mubr.f32.mxu0 0.0
  %1004 = vmatmul.mubr.f32.gmra.mrb[0].mxu0 %v922
  %v1005 = vpop.f32.mrb[0].mxu0
  %v1006 = vadd.f32 %v911, %v1005
  %v1007 = vpop.f32.mrb[0].mxu0
  %1008 = vdwg.mxu0
  %v1009 = vmul.f32 %v991, 2.3025851
  %v1010 = vmul.f32 %v996, 2.3025851
  %v1011 = vmul.f32 %v1001, 2.3025851
  %v1012 = vmul.f32 %v1006, 2.3025851
  %v1013 = vmul.f32 %v1009, 1.442695
  %v1014 = vpow.pop %v1013
  %v1015 = vmul.f32 %v1010, 1.442695
  %v1016 = vpow.pop %v1015
  %v1017 = vmul.f32 %v1011, 1.442695
  %v1018 = vpow.pop %v1017
  %v1019 = vmul.f32 %v1012, 1.442695
  %v1020 = vpow.pop %v1019
  %1025 = vrot.lane.b32.xlu0 %v1014, 127
  %v1026 = vpop.permute.xlu0 %1025
  %1027 = vrot.lane.b32.xlu0 %v1016, 127
  %v1028 = vpop.permute.xlu0 %1027
  %1029 = vrot.lane.b32.xlu0 %v1018, 127
  %v1030 = vpop.permute.xlu0 %1029
  %1031 = vrot.lane.b32.xlu0 %v1020, 127
  %v1032 = vpop.permute.xlu0 %1031
  %v1037 = vadd.f32 %v991, %v1026
  %v1038 = vadd.f32 %v996, %v1028
  %v1039 = vadd.f32 %v1001, %v1030
  %v1040 = vadd.f32 %v1006, %v1032
  %v1041 = vmul.f32 %v1037, 0.5
  %v1042 = vmul.f32 %v1038, 0.5
  %v1043 = vmul.f32 %v1039, 0.5
  %v1044 = vmul.f32 %v1040, 0.5
  %v1045 = vmul.f32 %v1041, 10.78
  %v1046 = vmul.f32 %v1042, 10.78
  %v1047 = vmul.f32 %v1043, 10.78
  %v1048 = vmul.f32 %v1044, 10.78
  %v1049 = vmul.f32 %v1045, 1.442695
  %v1050 = vpow.pop %v1049
  %v1051 = vmul.f32 %v1046, 1.442695
  %v1052 = vpow.pop %v1051
  %v1053 = vmul.f32 %v1047, 1.442695
  %v1054 = vpow.pop %v1053
  %v1055 = vmul.f32 %v1048, 1.442695
  %v1056 = vpow.pop %v1055
  %v1057 = vmul.f32 %v1050, 0.009428
  %v1058 = vmul.f32 %v1052, 0.009428
  %v1059 = vmul.f32 %v1054, 0.009428
  %v1060 = vmul.f32 %v1056, 0.009428
  %v1061 = vadd.f32 %v1057, 1.0
  %v1062 = vadd.f32 %v1058, 1.0
  %v1063 = vadd.f32 %v1059, 1.0
  %v1064 = vadd.f32 %v1060, 1.0
  %v1065 = vrcp.pop %v1061
  %v1066 = vrcp.pop %v1062
  %v1067 = vrcp.pop %v1063
  %v1068 = vrcp.pop %v1064
  %v1069 = vmul.f32 %v1065, 1.008
  %v1070 = vmul.f32 %v1066, 1.008
  %v1071 = vmul.f32 %v1067, 1.008
  %v1072 = vmul.f32 %v1068, 1.008
  %v1073 = vsub.f32 1.0, %v1069
  %v1074 = vsub.f32 1.0, %v1070
  %v1075 = vsub.f32 1.0, %v1071
  %v1076 = vsub.f32 1.0, %v1072
  %v1077 = vmul.f32 %v1073, %v991
  %v1078 = vmul.f32 %v1074, %v996
  %v1079 = vmul.f32 %v1075, %v1001
  %v1080 = vmul.f32 %v1076, %v1006
  %v1081 = vmul.f32 %v1069, %v1026
  %v1082 = vmul.f32 %v1070, %v1028
  %v1083 = vmul.f32 %v1071, %v1030
  %v1084 = vmul.f32 %v1072, %v1032
  %v1085 = vadd.f32 %v1077, %v1081
  %v1086 = vadd.f32 %v1078, %v1082
  %v1087 = vadd.f32 %v1079, %v1083
  %v1088 = vadd.f32 %v1080, %v1084
  %1093 = vrot.lane.b32.xlu0 %v991, 1
  %v1094 = vpop.permute.xlu0 %1093
  %1095 = vrot.lane.b32.xlu0 %v996, 1
  %v1096 = vpop.permute.xlu0 %1095
  %1097 = vrot.lane.b32.xlu0 %v1001, 1
  %v1098 = vpop.permute.xlu0 %1097
  %1099 = vrot.lane.b32.xlu0 %v1006, 1
  %v1100 = vpop.permute.xlu0 %1099
  %vm1105 = vcmask 7168
  %v1106 = vsel %vm1105, %v1085, %v1094
  %v1107 = vsel %vm1105, %v1086, %v1096
  %v1108 = vsel %vm1105, %v1087, %v1098
  %v1109 = vsel %vm1105, %v1088, %v1100
  %vm1110 = vcmask 15360
  %v1111 = vsel %vm1110, %v1106, %v1094
  %v1112 = vsel %vm1110, %v1107, %v1096
  %v1113 = vsel %vm1110, %v1108, %v1098
  %v1114 = vsel %vm1110, %v1109, %v1100
  %vm1115 = vcmask 23552
  %1116 = vst.msk [vmem:[%s3] sm:$0xff] %vm1115, %v1111
  %1117 = vst.msk [vmem:[%s3 + $0x8] sm:$0xff] %vm1115, %v1112
  %1118 = vst.msk [vmem:[%s3 + $0x10] sm:$0xff] %vm1115, %v1113
  %1119 = vst.msk [vmem:[%s3 + $0x18] sm:$0xff] %vm1115, %v1114
  // Predicated region
  $region10: #{conv_attn_2tower.1} parent=0 // pred_check
    _
  $region11: #{conv_attn_2tower.1} parent=0 // pred_check_branch
    %1121 = sbr.rel (0) target = $region13
  $region12: #{conv_attn_2tower.1} parent=0 // pred_region
    _
  $region13: #{conv_attn_2tower.1} parent=0 // pred_fallthru
    _
  // Predicated region
  $region14: #{conv_attn_2tower.1} parent=0 // pred_check
    _
  $region15: #{conv_attn_2tower.1} parent=0 // pred_check_branch
    %1123 = sbr.rel (0) target = $region17
  $region16: #{conv_attn_2tower.1} parent=0 // pred_region
    _
  $region17: #{conv_attn_2tower.1} parent=0 // pred_fallthru
    _
  // Predicated region
  $region18: #{conv_attn_2tower.1} parent=0 // pred_check
    _
  $region19: #{conv_attn_2tower.1} parent=0 // pred_check_branch
    %1125 = sbr.rel (0) target = $region21
  $region20: #{conv_attn_2tower.1} parent=0 // pred_region
    _
  $region21: #{conv_attn_2tower.1} parent=0 // pred_fallthru
    _
  // Predicated region
  $region22: #{conv_attn_2tower.1} parent=0 // pred_check
    _
  $region23: #{conv_attn_2tower.1} parent=0 // pred_check_branch
    %1127 = sbr.rel (0) target = $region25
  $region24: #{conv_attn_2tower.1} parent=0 // pred_region
    _
  $region25: #{conv_attn_2tower.1} parent=0 // pred_fallthru
    _

</llo_original>
